<compile_context>
chip_gen: v7x
topology: tpu7x:2x2x1
jax: 0.10.0
libtpu: 0.0.40
codegen_flags: <defaults>
</compile_context>

<pallas_src>
import jax
import jax.numpy as jnp
from jax import lax
from jax.experimental import pallas as pl
from jax.experimental.pallas import tpu as pltpu


# ------------------------- small host-side helpers -------------------------
def _round_up(x, m):
    return ((x + m - 1) // m) * m


def _pad2(x, rows, cols):
    return jnp.pad(x, ((0, rows - x.shape[0]), (0, cols - x.shape[1])))


def _pick_tiles(n_tgt, n_src):
    """Row-block (targets) / contraction-block (sources) tile sizes."""
    tm = 256 if n_tgt >= 256 else _round_up(max(n_tgt, 16), 16)
    tk = 512 if n_src >= 512 else _round_up(max(n_src, 128), 128)
    n_tgt_pad = _round_up(n_tgt, tm)
    # keep n_src_pad >= n_tgt_pad so the x_target row blocks always exist
    n_src_pad = _round_up(max(n_src, n_tgt_pad), tk)
    return tm, tk, n_tgt_pad, n_src_pad


def _vmem_limit(nbytes):
    # 2x headroom over the tile working set, floor 16MiB, cap 48MiB (safe on
    # v5e/v6e's 128MiB and v7x's 64MiB physical VMEM).
    return int(min(max(2 * nbytes, 16 << 20), 48 << 20))


# ------------------------------ Pallas kernels ------------------------------
def _make_binprep_kernel(c_valid):
    """Row standardization (unbiased std + 1e-4) followed by BinActive.

    Matches: x = (x - x.mean(1)) / (x.std(1) + 1e-4); x = BinActive()(x).
    Feature lanes >= c_valid are zero-padding: they are zero on input and are
    forced to zero on output so they never pollute mean / std / alpha.
    """
    inv_c = 1.0 / float(c_valid)
    inv_cm1 = 1.0 / float(max(c_valid - 1, 1))

    def kernel(x_ref, out_ref):
        x = x_ref[...].astype(jnp.float32)
        col = lax.broadcasted_iota(jnp.int32, x.shape, 1)
        valid = col < c_valid
        mu = jnp.sum(x, axis=1, keepdims=True) * inv_c          # pads are zero
        xc = jnp.where(valid, x - mu, 0.0)
        var = jnp.sum(xc * xc, axis=1, keepdims=True) * inv_cm1  # unbiased
        # exact reciprocal (approx=True is possible but kept exact so the
        # sign() decisions stay bit-stable against the f32 reference)
        inv_std = pl.reciprocal(jnp.sqrt(var) + 1e-4)
        xn = xc * inv_std
        alpha = jnp.sum(jnp.abs(xn), axis=1, keepdims=True) * inv_c
        out_ref[...] = (alpha * jnp.sign(xn)).astype(out_ref.dtype)

    return kernel


def _make_layer_kernel(*, use_root, apply_relu, apply_logsoftmax, out_valid):
    """One GNN layer: tiled A@x aggregation + fused projection epilogue."""

    def kernel(*refs):
        if use_root:
            (a_ref, xs_ref, xt_ref, wrel_ref, brel_ref,
             wroot_ref, broot_ref, out_ref, acc_ref) = refs
        else:
            a_ref, xs_ref, wrel_ref, brel_ref, out_ref, acc_ref = refs
            xt_ref = wroot_ref = broot_ref = None

        k = pl.program_id(1)

        @pl.when(k == 0)
        def _init():
            acc_ref[...] = jnp.zeros_like(acc_ref)

        # mean-aggregation: bf16 x bf16 MXU matmul, f32 accumulation
        acc_ref[...] += jnp.dot(a_ref[...], xs_ref[...],
                                preferred_element_type=jnp.float32)

        @pl.when(k == pl.num_programs(1) - 1)
        def _finalize():
            agg = acc_ref[...]
            out = jnp.dot(agg.astype(jnp.bfloat16), wrel_ref[...],
                          preferred_element_type=jnp.float32) + brel_ref[...]
            if use_root:
                out = out + jnp.dot(xt_ref[...], wroot_ref[...],
                                    preferred_element_type=jnp.float32) + broot_ref[...]
            if apply_relu:
                out = jnp.maximum(out, 0.0)
            if apply_logsoftmax:
                # masked log_softmax over the true (unpadded) output channels
                col = lax.broadcasted_iota(jnp.int32, out.shape, 1)
                z = jnp.where(col < out_valid, out, jnp.float32(-1e30))
                m = jnp.max(z, axis=-1, keepdims=True)
                lse = m + jnp.log(jnp.sum(jnp.exp(z - m), axis=-1, keepdims=True))
                out = z - lse
            out_ref[...] = out.astype(out_ref.dtype)

    return kernel


# ------------------------------ kernel wrappers ------------------------------
def _binactive_standardize(x_pad, c_valid):
    n_pad, c_pad = x_pad.shape
    rt = 256 if n_pad % 256 == 0 else (128 if n_pad % 128 == 0 else n_pad)
    nbytes = 2 * rt * c_pad * 4 + 2 * rt * c_pad * 2
    return pl.pallas_call(
        _make_binprep_kernel(c_valid),
        out_shape=jax.ShapeDtypeStruct((n_pad, c_pad), jnp.bfloat16),
        grid=(n_pad // rt,),
        in_specs=[pl.BlockSpec((rt, c_pad), lambda r: (r, 0))],
        out_specs=pl.BlockSpec((rt, c_pad), lambda r: (r, 0)),
        compiler_params=pltpu.CompilerParams(
            dimension_semantics=("parallel",),
            vmem_limit_bytes=_vmem_limit(nbytes)),
    )(x_pad)


def _gcn_layer(a_bf, x_bf, weights, *, use_root, apply_relu, apply_logsoftmax,
               out_valid, tm, tk):
    n_tgt_pad, n_src_pad = a_bf.shape
    cin_pad = x_bf.shape[1]
    wrel, brel = weights[0], weights[1]
    cout_pad = wrel.shape[1]

    grid = (n_tgt_pad // tm, n_src_pad // tk)

    in_specs = [
        pl.BlockSpec((tm, tk), lambda i, k: (i, k)),        # A block
        pl.BlockSpec((tk, cin_pad), lambda i, k: (k, 0)),   # x source block
    ]
    args = [a_bf, x_bf]
    if use_root:
        in_specs.append(pl.BlockSpec((tm, cin_pad), lambda i, k: (i, 0)))  # x target
        args.append(x_bf)
    in_specs += [
        pl.BlockSpec((cin_pad, cout_pad), lambda i, k: (0, 0)),
        pl.BlockSpec((1, cout_pad), lambda i, k: (0, 0)),
    ]
    args += [wrel, brel]
    if use_root:
        wroot, broot = weights[2], weights[3]
        in_specs += [
            pl.BlockSpec((cin_pad, cout_pad), lambda i, k: (0, 0)),
            pl.BlockSpec((1, cout_pad), lambda i, k: (0, 0)),
        ]
        args += [wroot, broot]

    nbytes = (2 * tm * tk * 2 + 2 * tk * cin_pad * 2
              + (2 * tm * cin_pad * 2 if use_root else 0)
              + 4 * cin_pad * cout_pad * 2 + 4 * cout_pad * 4
              + 2 * tm * cout_pad * 4 + tm * cin_pad * 4)

    kernel = _make_layer_kernel(use_root=use_root, apply_relu=apply_relu,
                                apply_logsoftmax=apply_logsoftmax,
                                out_valid=out_valid)
    return pl.pallas_call(
        kernel,
        out_shape=jax.ShapeDtypeStruct((n_tgt_pad, cout_pad), jnp.float32),
        grid=grid,
        in_specs=in_specs,
        out_specs=pl.BlockSpec((tm, cout_pad), lambda i, k: (i, 0)),
        scratch_shapes=[pltpu.VMEM((tm, cin_pad), jnp.float32)],
        compiler_params=pltpu.CompilerParams(
            dimension_semantics=("parallel", "arbitrary"),
            vmem_limit_bytes=_vmem_limit(nbytes)),
    )(*args)


# --------------------------- glue (plain JAX host) ---------------------------
def build_mean_adj(edge_index, n_tgt, n_src):
    """Dense PyG scatter-'mean' operator: A[t,s] = (#edges s->t) / in_degree(t)."""
    src = edge_index[0].astype(jnp.int32)
    dst = edge_index[1].astype(jnp.int32)
    counts = jnp.zeros((n_tgt, n_src), jnp.float32).at[dst, src].add(1.0)
    deg = jnp.sum(counts, axis=1, keepdims=True)
    return counts * jnp.where(deg > 0, 1.0 / jnp.maximum(deg, 1.0), 0.0)


def _prep_weight(w, b, cin_pad, cout_pad, binarize):
    """torch-layout (out,in) weight -> bf16 (in_pad, out_pad); bias -> f32 (1, out_pad)."""
    if binarize:  # BinLinear weight_hat = sign(w) * (||w||_1 / in_features)
        w = jnp.sign(w) * jnp.mean(jnp.abs(w), axis=1, keepdims=True)
    wt = jnp.transpose(w).astype(jnp.float32)
    wt = _pad2(wt, cin_pad, cout_pad)
    bp = jnp.pad(b.astype(jnp.float32), (0, cout_pad - b.shape[0]))[None, :]
    return wt.astype(jnp.bfloat16), bp


def neighbor_sampling_gcn_forward(x, adjs, params, *, model, binarize,
                                  in_channels, hidden_channels, out_channels):
    assert model in ("indGCN", "GraphSAGE"), "Only indGCN and GraphSAGE are available."
    use_root = (model == "GraphSAGE")
    num_layers = len(adjs)
    c_dims = [in_channels, hidden_channels, out_channels]
    c_pads = [_round_up(c, 128) for c in c_dims]

    h = x.astype(jnp.float32)
    for i, (edge_index, _, size) in enumerate(adjs):
        n_src, n_tgt = int(size[0]), int(size[1])
        cin, cout = c_dims[i], c_dims[i + 1]
        cin_pad, cout_pad = c_pads[i], c_pads[i + 1]
        last = (i == num_layers - 1)

        tm, tk, n_tgt_pad, n_src_pad = _pick_tiles(n_tgt, n_src)

        # zero-pad node rows and feature lanes
        h_pad = _pad2(h[:n_src, :cin].astype(jnp.float32), n_src_pad, cin_pad)

        if binarize:
            h_bf = _binactive_standardize(h_pad, cin)     # standardize + BinActive -> bf16
        else:
            h_bf = h_pad.astype(jnp.bfloat16)

        # TODO(synk): for large sparse graphs, replace the densified adjacency
        # with a scalar-prefetch (CSR) gather aggregation to keep work O(E*C).
        a_bf = build_mean_adj(edge_index, n_tgt_pad, n_src_pad).astype(jnp.bfloat16)

        p = params[f"conv{i + 1}"]
        wrel, brel = _prep_weight(p["lin_w"], p["lin_b"], cin_pad, cout_pad, binarize)
        weights = [wrel, brel]
        if use_root:
            wroot, broot = _prep_weight(p["root_w"], p["root_b"], cin_pad, cout_pad, binarize)
            weights += [wroot, broot]

        out_pad = _gcn_layer(a_bf, h_bf, weights, use_root=use_root,
                             apply_relu=not last, apply_logsoftmax=last,
                             out_valid=cout, tm=tm, tk=tk)
        # TODO(synk): dropout runs with p=0.0 (identity); stochastic training-mode
        # dropout would need pltpu.prng_* in-kernel and is intentionally omitted.
        h = out_pad[:n_tgt, :cout]
    return h


# --------------------- pure-JAX reference (correctness) ---------------------
def reference_forward(x, adjs, params, *, model, binarize):
    """f32 re-implementation of NeighborSamplingGCN.forward.

    Matmul operands are rounded to bf16 (f32 accumulation) to mirror the
    kernel's deliberate mixed-precision choice; all other math is plain f32.
    """
    hi = lax.Precision.HIGHEST

    def q(v):
        return v.astype(jnp.bfloat16).astype(jnp.float32)

    def binprep(v):
        mu = jnp.mean(v, axis=1, keepdims=True)
        xc = v - mu
        std = jnp.sqrt(jnp.sum(xc * xc, axis=1, keepdims=True) / (v.shape[1] - 1))
        vn = xc * (1.0 / (std + 1e-4))
        return jnp.mean(jnp.abs(vn), axis=1, keepdims=True) * jnp.sign(vn)

    def w_hat(w):
        if binarize:
            return jnp.sign(w) * jnp.mean(jnp.abs(w), axis=1, keepdims=True)
        return w

    h = x.astype(jnp.float32)
    num_layers = len(adjs)
    for i, (edge_index, _, size) in enumerate(adjs):
        n_src, n_tgt = int(size[0]), int(size[1])
        if binarize:
            h = binprep(h)
        a = q(build_mean_adj(edge_index, n_tgt, n_src))
        hq = q(h)
        agg = jnp.dot(a, hq, precision=hi)
        p = params[f"conv{i + 1}"]
        out = jnp.dot(q(agg), q(w_hat(p["lin_w"])).T, precision=hi) + p["lin_b"]
        if model == "GraphSAGE":
            out = (out + jnp.dot(hq[:n_tgt], q(w_hat(p["root_w"])).T, precision=hi)
                   + p["root_b"])
        if i != num_layers - 1:
            out = jnp.maximum(out, 0.0)
        h = out
    return jax.nn.log_softmax(h, axis=-1)


# --------------------------------- test data ---------------------------------
def init_params(key, in_c, hid_c, out_c):
    ks = jax.random.split(key, 8)

    def lin(kw, kb, cout, cin):
        w = jax.random.normal(kw, (cout, cin), jnp.float32) * (1.0 / cin) ** 0.5
        b = jax.random.normal(kb, (cout,), jnp.float32) * 0.1
        return w, b

    p = {"conv1": {}, "conv2": {}}
    p["conv1"]["lin_w"], p["conv1"]["lin_b"] = lin(ks[0], ks[1], hid_c, in_c)
    p["conv1"]["root_w"], p["conv1"]["root_b"] = lin(ks[2], ks[3], hid_c, in_c)
    p["conv2"]["lin_w"], p["conv2"]["lin_b"] = lin(ks[4], ks[5], out_c, hid_c)
    p["conv2"]["root_w"], p["conv2"]["root_b"] = lin(ks[6], ks[7], out_c, hid_c)
    return p


def make_hop_edges(n_src, n_tgt, fanout):
    dst = jnp.repeat(jnp.arange(n_tgt, dtype=jnp.int32), fanout)
    off = jnp.tile(jnp.arange(fanout, dtype=jnp.int32), n_tgt)
    src = (dst * 3 + off * 7) % n_src
    return jnp.stack([src, dst], axis=0)


if __name__ == "__main__":
    IN_C, HID_C, OUT_C = 8, 32, 4
    N0, N1, N2 = 24, 16, 8          # |src hop1| -> |tgt hop1|=|src hop2| -> |tgt hop2|

    key = jax.random.PRNGKey(0)
    kx, kp = jax.random.split(key)
    x = jax.random.normal(kx, (N0, IN_C), jnp.float32)
    params = init_params(kp, IN_C, HID_C, OUT_C)

    e1 = make_hop_edges(N0, N1, fanout=4)
    e2 = make_hop_edges(N1, N2, fanout=3)
    adjs = [(e1, None, (N0, N1)), (e2, None, (N1, N2))]   # (edge_index, e_id, size)

    for model in ("GraphSAGE", "indGCN"):
        for binarize in (False, True):
            out = neighbor_sampling_gcn_forward(
                x, adjs, params, model=model, binarize=binarize,
                in_channels=IN_C, hidden_channels=HID_C, out_channels=OUT_C)
            out = jax.block_until_ready(out)
            ref = reference_forward(x, adjs, params, model=model, binarize=binarize)
            assert out.shape == (N2, OUT_C)
            assert bool(jnp.all(jnp.isfinite(out)))
            err = float(jnp.max(jnp.abs(out - ref)))
            assert jnp.allclose(out, ref, atol=2e-2, rtol=2e-2), (
                f"mismatch model={model} binarize={binarize} max_abs_err={err:.5f}")

    print("KERNEL_OK")
</pallas_src>

<mosaic_0001>
module attributes {stable_mosaic.version = 11 : i64} {
  func.func @kernel(%arg0: i32, %arg1: i32, %arg2: memref<16x128xbf16, #tpu.memory_space<vmem>>, %arg3: memref<128x128xbf16, #tpu.memory_space<vmem>>, %arg4: memref<16x128xbf16, #tpu.memory_space<vmem>>, %arg5: memref<128x128xbf16, #tpu.memory_space<vmem>>, %arg6: memref<1x128xf32, #tpu.memory_space<vmem>>, %arg7: memref<128x128xbf16, #tpu.memory_space<vmem>>, %arg8: memref<1x128xf32, #tpu.memory_space<vmem>>, %arg9: memref<16x128xf32, #tpu.memory_space<vmem>>, %arg10: memref<16x128xf32, #tpu.memory_space<vmem>>) attributes {dimension_semantics = [#tpu.dimension_semantics<parallel>, #tpu.dimension_semantics<arbitrary>], iteration_bounds = array<i64: 1, 1>, scalar_prefetch = 0 : i64, scratch_operands = 1 : i64, tpu.core_type = #tpu.core_type<tc>, window_params = [{transform_indices = @transform_0, window_bounds = array<i64: 16, 128>}, {transform_indices = @transform_1, window_bounds = array<i64: 128, 128>}, {transform_indices = @transform_2, window_bounds = array<i64: 16, 128>}, {pipeline_mode = #tpu.pipeline_mode<synchronous>, transform_indices = @transform_3, window_bounds = array<i64: 128, 128>}, {pipeline_mode = #tpu.pipeline_mode<synchronous>, transform_indices = @transform_4, window_bounds = array<i64: 1, 128>}, {pipeline_mode = #tpu.pipeline_mode<synchronous>, transform_indices = @transform_5, window_bounds = array<i64: 128, 128>}, {pipeline_mode = #tpu.pipeline_mode<synchronous>, transform_indices = @transform_6, window_bounds = array<i64: 1, 128>}, {transform_indices = @transform_7, window_bounds = array<i64: 16, 128>}]} {
    %c0_i32 = arith.constant 0 : i32
    %0 = arith.cmpi eq, %arg1, %c0_i32 : i32
    %1 = arith.extui %0 : i1 to i32
    %c0_i32_0 = arith.constant 0 : i32
    %2 = arith.cmpi ne, %1, %c0_i32_0 : i32
    scf.if %2 {
      %cst_10 = arith.constant 0.000000e+00 : f32
      %12 = vector.broadcast %cst_10 : f32 to vector<16x128xf32>
      %c0_11 = arith.constant 0 : index
      %c0_12 = arith.constant 0 : index
      %13 = vector.load %arg10[%c0_11, %c0_12] : memref<16x128xf32, #tpu.memory_space<vmem>>, vector<16x128xf32>
      tpu.vector_store %arg10[%c0_11, %c0_12], %12 {strides = array<i32>} : memref<16x128xf32, #tpu.memory_space<vmem>>, vector<16x128xf32>,
    } else {
    }
    %c0 = arith.constant 0 : index
    %c0_1 = arith.constant 0 : index
    %3 = vector.load %arg10[%c0, %c0_1] : memref<16x128xf32, #tpu.memory_space<vmem>>, vector<16x128xf32>
    %c0_2 = arith.constant 0 : index
    %c0_3 = arith.constant 0 : index
    %4 = vector.load %arg2[%c0_2, %c0_3] : memref<16x128xbf16, #tpu.memory_space<vmem>>, vector<16x128xbf16>
    %c0_4 = arith.constant 0 : index
    %c0_5 = arith.constant 0 : index
    %5 = vector.load %arg3[%c0_4, %c0_5] : memref<128x128xbf16, #tpu.memory_space<vmem>>, vector<128x128xbf16>
    %cst = arith.constant dense<0.000000e+00> : vector<16x128xf32>
    %6 = tpu.matmul %4, %5, %cst {dimension_numbers = #tpu.dot_dimension_numbers<[1], [0], [0], [1], [0, 0, 1, 1], [], []>} : vector<16x128xbf16>, vector<128x128xbf16>, vector<16x128xf32> -> vector<16x128xf32>
    %7 = arith.addf %3, %6 : vector<16x128xf32>
    %c0_6 = arith.constant 0 : index
    %c0_7 = arith.constant 0 : index
    %8 = vector.load %arg10[%c0_6, %c0_7] : memref<16x128xf32, #tpu.memory_space<vmem>>, vector<16x128xf32>
    tpu.vector_store %arg10[%c0_6, %c0_7], %7 {strides = array<i32>} : memref<16x128xf32, #tpu.memory_space<vmem>>, vector<16x128xf32>,
    %c0_i32_8 = arith.constant 0 : i32
    %9 = arith.cmpi eq, %arg1, %c0_i32_8 : i32
    %10 = arith.extui %9 : i1 to i32
    %c0_i32_9 = arith.constant 0 : i32
    %11 = arith.cmpi ne, %10, %c0_i32_9 : i32
    scf.if %11 {
      %c0_10 = arith.constant 0 : index
      %c0_11 = arith.constant 0 : index
      %12 = vector.load %arg10[%c0_10, %c0_11] : memref<16x128xf32, #tpu.memory_space<vmem>>, vector<16x128xf32>
      %13 = arith.truncf %12 : vector<16x128xf32> to vector<16x128xbf16>
      %c0_12 = arith.constant 0 : index
      %c0_13 = arith.constant 0 : index
      %14 = vector.load %arg5[%c0_12, %c0_13] : memref<128x128xbf16, #tpu.memory_space<vmem>>, vector<128x128xbf16>
      %cst_14 = arith.constant dense<0.000000e+00> : vector<16x128xf32>
      %15 = tpu.matmul %13, %14, %cst_14 {dimension_numbers = #tpu.dot_dimension_numbers<[1], [0], [0], [1], [0, 0, 1, 1], [], []>} : vector<16x128xbf16>, vector<128x128xbf16>, vector<16x128xf32> -> vector<16x128xf32>
      %c0_15 = arith.constant 0 : index
      %c0_16 = arith.constant 0 : index
      %16 = vector.load %arg6[%c0_15, %c0_16] : memref<1x128xf32, #tpu.memory_space<vmem>>, vector<1x128xf32>
      %17 = vector.broadcast %16 : vector<1x128xf32> to vector<16x128xf32>
      %18 = arith.addf %15, %17 : vector<16x128xf32>
      %c0_17 = arith.constant 0 : index
      %c0_18 = arith.constant 0 : index
      %19 = vector.load %arg4[%c0_17, %c0_18] : memref<16x128xbf16, #tpu.memory_space<vmem>>, vector<16x128xbf16>
      %c0_19 = arith.constant 0 : index
      %c0_20 = arith.constant 0 : index
      %20 = vector.load %arg7[%c0_19, %c0_20] : memref<128x128xbf16, #tpu.memory_space<vmem>>, vector<128x128xbf16>
      %cst_21 = arith.constant dense<0.000000e+00> : vector<16x128xf32>
      %21 = tpu.matmul %19, %20, %cst_21 {dimension_numbers = #tpu.dot_dimension_numbers<[1], [0], [0], [1], [0, 0, 1, 1], [], []>} : vector<16x128xbf16>, vector<128x128xbf16>, vector<16x128xf32> -> vector<16x128xf32>
      %22 = arith.addf %18, %21 : vector<16x128xf32>
      %c0_22 = arith.constant 0 : index
      %c0_23 = arith.constant 0 : index
      %23 = vector.load %arg8[%c0_22, %c0_23] : memref<1x128xf32, #tpu.memory_space<vmem>>, vector<1x128xf32>
      %24 = vector.broadcast %23 : vector<1x128xf32> to vector<16x128xf32>
      %25 = arith.addf %22, %24 : vector<16x128xf32>
      %cst_24 = arith.constant 0.000000e+00 : f32
      %26 = vector.broadcast %cst_24 : f32 to vector<16x128xf32>
      %27 = arith.maximumf %25, %26 : vector<16x128xf32>
      %c0_25 = arith.constant 0 : index
      %c0_26 = arith.constant 0 : index
      %28 = vector.load %arg9[%c0_25, %c0_26] : memref<16x128xf32, #tpu.memory_space<vmem>>, vector<16x128xf32>
      tpu.vector_store %arg9[%c0_25, %c0_26], %27 {strides = array<i32>} : memref<16x128xf32, #tpu.memory_space<vmem>>, vector<16x128xf32>,
    } else {
    }
    return
  }
  func.func @transform_0(%arg0: i32, %arg1: i32) -> (i32, i32) {
    %c0_i32 = arith.constant 0 : i32
    return %arg0, %arg1 : i32, i32
  }
  func.func @transform_1(%arg0: i32, %arg1: i32) -> (i32, i32) {
    %c0_i32 = arith.constant 0 : i32
    %c0_i32_0 = arith.constant 0 : i32
    return %arg1, %c0_i32 : i32, i32
  }
  func.func @transform_2(%arg0: i32, %arg1: i32) -> (i32, i32) {
    %c0_i32 = arith.constant 0 : i32
    %c0_i32_0 = arith.constant 0 : i32
    return %arg0, %c0_i32 : i32, i32
  }
  func.func @transform_3(%arg0: i32, %arg1: i32) -> (i32, i32) {
    %c0_i32 = arith.constant 0 : i32
    %c0_i32_0 = arith.constant 0 : i32
    %c0_i32_1 = arith.constant 0 : i32
    return %c0_i32, %c0_i32_0 : i32, i32
  }
  func.func @transform_4(%arg0: i32, %arg1: i32) -> (i32, i32) {
    %c0_i32 = arith.constant 0 : i32
    %c0_i32_0 = arith.constant 0 : i32
    %c0_i32_1 = arith.constant 0 : i32
    return %c0_i32, %c0_i32_0 : i32, i32
  }
  func.func @transform_5(%arg0: i32, %arg1: i32) -> (i32, i32) {
    %c0_i32 = arith.constant 0 : i32
    %c0_i32_0 = arith.constant 0 : i32
    %c0_i32_1 = arith.constant 0 : i32
    return %c0_i32, %c0_i32_0 : i32, i32
  }
  func.func @transform_6(%arg0: i32, %arg1: i32) -> (i32, i32) {
    %c0_i32 = arith.constant 0 : i32
    %c0_i32_0 = arith.constant 0 : i32
    %c0_i32_1 = arith.constant 0 : i32
    return %c0_i32, %c0_i32_0 : i32, i32
  }
  func.func @transform_7(%arg0: i32, %arg1: i32) -> (i32, i32) {
    %c0_i32 = arith.constant 0 : i32
    %c0_i32_0 = arith.constant 0 : i32
    return %arg0, %c0_i32 : i32, i32
  }
}

</mosaic_0001>

<llo_original>
// kernel: tpu_custom_call.1
$region0: #{tpu_custom_call.1}
  #allocation0 [shape = 'u32[]', space=smem, size = 0x4, offset = 0x4, fixed_abs, tag = 'smem constant byte address 0x4 - core index']
  #allocation1 [shape = 'u32[144,128]{1,0:T(1,128)}', space=vmem, size = 0x12000, scoped, tag = 'internal scratch']
  #allocation2 [shape = 'f32[16,128]{1,0:T(8,128)}', space=vmem, size = 0x2000, scoped, tag = 'scratch operand']
  %s0 = inlined_call_operand.hbm [shape: bf16[16,128], index: 0, kind: input, shape index: {}]
  %s1 = inlined_call_operand.hbm [shape: bf16[128,128], index: 1, kind: input, shape index: {}]
  %s2 = inlined_call_operand.hbm [shape: bf16[128,128], index: 2, kind: input, shape index: {}]
  %s3 = inlined_call_operand.hbm [shape: bf16[128,128], index: 3, kind: input, shape index: {}]
  %s4 = inlined_call_operand.vmem [shape: f32[1,128], index: 4, kind: input, shape index: {}]
  %s5 = inlined_call_operand.hbm [shape: bf16[128,128], index: 5, kind: input, shape index: {}]
  %s6 = inlined_call_operand.vmem [shape: f32[1,128], index: 6, kind: input, shape index: {}]
  %s7 = inlined_call_operand.hbm [shape: f32[16,128], index: 7, kind: output, shape index: {}]
  %s8 = sld [smem:[#allocation0]]
  $region66: #{tpu_custom_call.1} parent=0
    _
  %s10 = ssub.s32 1, %s8
  %s11 = scalar_select 0, %s10, %s8
  $region1: #{tpu_custom_call.1} parent=0
    #allocation3 [shape = 'u8[4096]{0}', space=vmem, size = 0x1000, scoped, tag = 'input window, operand 0, single buffered']
    #allocation4 [shape = 's32[1]{0}', space=sflag, size = 0x4, scoped, tag = 'scoped memory for tpu_custom_call.1']
    #allocation5 [shape = 's32[1]{0}', space=sflag, size = 0x4, scoped, tag = 'scoped memory for tpu_custom_call.1']
    #allocation6 [shape = 'u8[32768]{0}', space=vmem, size = 0x8000, scoped, tag = 'input window, operand 1, single buffered']
    #allocation7 [shape = 's32[1]{0}', space=sflag, size = 0x4, scoped, tag = 'scoped memory for tpu_custom_call.1']
    #allocation8 [shape = 'u8[4096]{0}', space=vmem, size = 0x1000, scoped, tag = 'input window, operand 2, single buffered']
    #allocation9 [shape = 'u8[32768]{0}', space=vmem, size = 0x8000, scoped, tag = 'input window, operand 3, single buffered']
    #allocation10 [shape = 's32[1]{0}', space=sflag, size = 0x4, scoped, tag = 'scoped memory for tpu_custom_call.1']
    #allocation11 [shape = 'u8[32768]{0}', space=vmem, size = 0x8000, scoped, tag = 'input window, operand 5, single buffered']
    #allocation12 [shape = 'u8[8192]{0}', space=vmem, size = 0x2000, scoped, tag = 'output window, operand 0, single buffered']
    %12 = vsyncpa [#allocation4], 0
    %13 = vsyncpa [#allocation7], 0
    %14 = vsyncpa [#allocation10], 0
    %15 = vsyncpa [#allocation5], 0
    // Predicated region
    $region2: #{tpu_custom_call.1} parent=1 // pred_check
      _
    $region3: #{tpu_custom_call.1} parent=1 // pred_check_branch
      %17 = sbr.rel (0) target = $region5
    $region4: #{tpu_custom_call.1} parent=1 // pred_region
      %s19 = ssub.s32 128, 128
      %20 = vsyncadd [#allocation4], %s19
      %s21 = sshll.u32 [#allocation3], 4
      %s22 = int_to_ptr.vmem [resolvable:$true] %s21
      %27 = dma.hbm_to_vmem [thread:$0]  %s0, 128, %s22, [#allocation4], 64, 64, 4
    $region5: #{tpu_custom_call.1} parent=1 // pred_fallthru
      _
    // Predicated region
    $region6: #{tpu_custom_call.1} parent=1 // pred_check
      _
    $region7: #{tpu_custom_call.1} parent=1 // pred_check_branch
      %29 = sbr.rel (0) target = $region9
    $region8: #{tpu_custom_call.1} parent=1 // pred_region
      %s31 = ssub.s32 1024, 1024
      %32 = vsyncadd [#allocation7], %s31
      %s33 = sshll.u32 [#allocation6], 4
      %s34 = int_to_ptr.vmem [resolvable:$true] %s33
      %39 = dma.hbm_to_vmem [thread:$0]  %s1, 1024, %s34, [#allocation7], 64, 64, 4
    $region9: #{tpu_custom_call.1} parent=1 // pred_fallthru
      _
    // Predicated region
    $region10: #{tpu_custom_call.1} parent=1 // pred_check
      _
    $region11: #{tpu_custom_call.1} parent=1 // pred_check_branch
      %41 = sbr.rel (0) target = $region13
    $region12: #{tpu_custom_call.1} parent=1 // pred_region
      %s43 = ssub.s32 128, 128
      %44 = vsyncadd [#allocation7], %s43
      %s45 = sshll.u32 [#allocation8], 4
      %s46 = int_to_ptr.vmem [resolvable:$true] %s45
      %51 = dma.hbm_to_vmem [thread:$0]  %s2, 128, %s46, [#allocation7], 64, 64, 4
    $region13: #{tpu_custom_call.1} parent=1 // pred_fallthru
      _
    // Predicated region
    $region14: #{tpu_custom_call.1} parent=1 // pred_check
      _
    $region15: #{tpu_custom_call.1} parent=1 // pred_check_branch
      %53 = sbr.rel (0) target = $region17
    $region16: #{tpu_custom_call.1} parent=1 // pred_region
      %s55 = ssub.s32 1024, 1024
      %56 = vsyncadd [#allocation10], %s55
      %s57 = sshll.u32 [#allocation9], 4
      %s58 = int_to_ptr.vmem [resolvable:$true] %s57
      %63 = dma.hbm_to_vmem [thread:$0]  %s3, 1024, %s58, [#allocation10], 64, 64, 4
    $region17: #{tpu_custom_call.1} parent=1 // pred_fallthru
      _
    // Predicated region
    $region18: #{tpu_custom_call.1} parent=1 // pred_check
      _
    $region19: #{tpu_custom_call.1} parent=1 // pred_check_branch
      %65 = sbr.rel (0) target = $region21
    $region20: #{tpu_custom_call.1} parent=1 // pred_region
      _
    $region21: #{tpu_custom_call.1} parent=1 // pred_fallthru
      _
    // Predicated region
    $region22: #{tpu_custom_call.1} parent=1 // pred_check
      _
    $region23: #{tpu_custom_call.1} parent=1 // pred_check_branch
      %67 = sbr.rel (0) target = $region25
    $region24: #{tpu_custom_call.1} parent=1 // pred_region
      %s69 = ssub.s32 1024, 1024
      %70 = vsyncadd [#allocation10], %s69
      %s71 = sshll.u32 [#allocation11], 4
      %s72 = int_to_ptr.vmem [resolvable:$true] %s71
      %77 = dma.hbm_to_vmem [thread:$0]  %s5, 1024, %s72, [#allocation10], 64, 64, 4
    $region25: #{tpu_custom_call.1} parent=1 // pred_fallthru
      _
    // Predicated region
    $region26: #{tpu_custom_call.1} parent=1 // pred_check
      _
    $region27: #{tpu_custom_call.1} parent=1 // pred_check_branch
      %79 = sbr.rel (0) target = $region29
    $region28: #{tpu_custom_call.1} parent=1 // pred_region
      _
    $region29: #{tpu_custom_call.1} parent=1 // pred_fallthru
      _
    // Predicated region
    $region30: #{tpu_custom_call.1} parent=1 // pred_check
      _
    $region31: #{tpu_custom_call.1} parent=1 // pred_check_branch
      %81 = sbr.rel (0) target = $region33
    $region32: #{tpu_custom_call.1} parent=1 // pred_region
      %82 = dma.done [#allocation4], 128
    $region33: #{tpu_custom_call.1} parent=1 // pred_fallthru
      _
    // Predicated region
    $region34: #{tpu_custom_call.1} parent=1 // pred_check
      _
    $region35: #{tpu_custom_call.1} parent=1 // pred_check_branch
      %84 = sbr.rel (0) target = $region37
    $region36: #{tpu_custom_call.1} parent=1 // pred_region
      %85 = dma.done [#allocation7], 1024
    $region37: #{tpu_custom_call.1} parent=1 // pred_fallthru
      _
    // Predicated region
    $region38: #{tpu_custom_call.1} parent=1 // pred_check
      _
    $region39: #{tpu_custom_call.1} parent=1 // pred_check_branch
      %87 = sbr.rel (0) target = $region41
    $region40: #{tpu_custom_call.1} parent=1 // pred_region
      %88 = dma.done [#allocation7], 128
    $region41: #{tpu_custom_call.1} parent=1 // pred_fallthru
      _
    // Predicated region
    $region42: #{tpu_custom_call.1} parent=1 // pred_check
      _
    $region43: #{tpu_custom_call.1} parent=1 // pred_check_branch
      %90 = sbr.rel (0) target = $region45
    $region44: #{tpu_custom_call.1} parent=1 // pred_region
      %91 = dma.done [#allocation10], 1024
    $region45: #{tpu_custom_call.1} parent=1 // pred_fallthru
      _
    // Predicated region
    $region46: #{tpu_custom_call.1} parent=1 // pred_check
      _
    $region47: #{tpu_custom_call.1} parent=1 // pred_check_branch
      %93 = sbr.rel (0) target = $region49
    $region48: #{tpu_custom_call.1} parent=1 // pred_region
      %94 = dma.done [#allocation10], 1024
    $region49: #{tpu_custom_call.1} parent=1 // pred_fallthru
      _
    %p96 = scmp.eq.s32.totalorder 0, 0
    // Predicated region
    $region50: #{tpu_custom_call.1} parent=1 // pred_check
      %p97 = pneg %p96
    $region51: #{tpu_custom_call.1} parent=1 // pred_check_branch
      %99 = sbr.rel (%p97) target = $region53
    $region52: #{tpu_custom_call.1} parent=1 // pred_region
      %100 = vst [vmem:[#allocation2] sm:$0xff] 0.0
      %101 = vst [vmem:[#allocation2 + $0x8] sm:$0xff] 0.0
    $region53: #{tpu_custom_call.1} parent=1 // pred_fallthru
      _
    %v102 = vld [vmem:[#allocation2] sm:$0xff]
    %v103 = vld [vmem:[#allocation2 + $0x8] sm:$0xff]
    %v104 = vld [vmem:[#allocation3] sm:$0xf]
    %v105 = vld [vmem:[#allocation3 + $0x4] sm:$0xf]
    %v106 = vld [vmem:[#allocation6] sm:$0xf]
    %v107 = vld [vmem:[#allocation6 + $0x4] sm:$0xf]
    %v108 = vld [vmem:[#allocation6 + $0x8] sm:$0xf]
    %v109 = vld [vmem:[#allocation6 + $0xc] sm:$0xf]
    %v110 = vld [vmem:[#allocation6 + $0x10] sm:$0xf]
    %v111 = vld [vmem:[#allocation6 + $0x14] sm:$0xf]
    %v112 = vld [vmem:[#allocation6 + $0x18] sm:$0xf]
    %v113 = vld [vmem:[#allocation6 + $0x1c] sm:$0xf]
    %v114 = vld [vmem:[#allocation6 + $0x20] sm:$0xf]
    %v115 = vld [vmem:[#allocation6 + $0x24] sm:$0xf]
    %v116 = vld [vmem:[#allocation6 + $0x28] sm:$0xf]
    %v117 = vld [vmem:[#allocation6 + $0x2c] sm:$0xf]
    %v118 = vld [vmem:[#allocation6 + $0x30] sm:$0xf]
    %v119 = vld [vmem:[#allocation6 + $0x34] sm:$0xf]
    %v120 = vld [vmem:[#allocation6 + $0x38] sm:$0xf]
    %v121 = vld [vmem:[#allocation6 + $0x3c] sm:$0xf]
    %v124 = vunpack.c.l.b16 %v104
    %v125 = vunpack.c.l.b16 %v105
    %v126 = vpack.c.b16 %v125, %v124
    %v144 = vunpack.c.l.b16 %v106
    %v145 = vunpack.c.l.b16 %v107
    %v146 = vunpack.c.l.b16 %v108
    %v147 = vunpack.c.l.b16 %v109
    %v148 = vunpack.c.l.b16 %v110
    %v149 = vunpack.c.l.b16 %v111
    %v150 = vunpack.c.l.b16 %v112
    %v151 = vunpack.c.l.b16 %v113
    %v152 = vunpack.c.l.b16 %v114
    %v153 = vunpack.c.l.b16 %v115
    %v154 = vunpack.c.l.b16 %v116
    %v155 = vunpack.c.l.b16 %v117
    %v156 = vunpack.c.l.b16 %v118
    %v157 = vunpack.c.l.b16 %v119
    %v158 = vunpack.c.l.b16 %v120
    %v159 = vunpack.c.l.b16 %v121
    %v160 = vpack.c.b16 %v145, %v144
    %v161 = vpack.c.b16 %v147, %v146
    %v162 = vpack.c.b16 %v149, %v148
    %v163 = vpack.c.b16 %v151, %v150
    %v164 = vpack.c.b16 %v153, %v152
    %v165 = vpack.c.b16 %v155, %v154
    %v166 = vpack.c.b16 %v157, %v156
    %v167 = vpack.c.b16 %v159, %v158
    %176 = vmatprep.subr.bf16.mxu0 0
    %177 = vmatpush1.bf16.msra.mxu0 %v160
    %178 = vmatprep.subr.bf16.mxu0 0
    %179 = vmatpush1.bf16.msra.mxu0 %v161
    %180 = vmatprep.subr.bf16.mxu0 0
    %181 = vmatpush1.bf16.msra.mxu0 %v162
    %182 = vmatprep.subr.bf16.mxu0 0
    %183 = vmatpush1.bf16.msra.mxu0 %v163
    %184 = vmatprep.subr.bf16.mxu0 0
    %185 = vmatpush1.bf16.msra.mxu0 %v164
    %186 = vmatprep.subr.bf16.mxu0 0
    %187 = vmatpush1.bf16.msra.mxu0 %v165
    %188 = vmatprep.subr.bf16.mxu0 0
    %189 = vmatpush1.bf16.msra.mxu0 %v166
    %190 = vmatprep.subr.bf16.mxu0 0
    %191 = vmatpush1.bf16.msra.mxu0 %v167
    %192 = vmatprep.subr.bf16.mxu0 0
    %193 = vmatpush1.bf16.msra.mxu0 0
    %194 = vmatprep.subr.bf16.mxu0 0
    %195 = vmatpush1.bf16.msra.mxu0 0
    %196 = vmatprep.subr.bf16.mxu0 0
    %197 = vmatpush1.bf16.msra.mxu0 0
    %198 = vmatprep.subr.bf16.mxu0 0
    %199 = vmatpush1.bf16.msra.mxu0 0
    %200 = vmatprep.subr.bf16.mxu0 0
    %201 = vmatpush1.bf16.msra.mxu0 0
    %202 = vmatprep.subr.bf16.mxu0 0
    %203 = vmatpush1.bf16.msra.mxu0 0
    %204 = vmatprep.subr.bf16.mxu0 0
    %205 = vmatpush1.bf16.msra.mxu0 0
    %206 = vmatprep.subr.bf16.mxu0 0
    %207 = vmatpush1.bf16.msra.mxu0 0
    %208 = vmatprep.mubr.bf16.mxu0 0
    %209 = vmatmul.mubr.bf16.gmra.mrb[0].mxu0 %v126
    %v210 = vpop.f32.mrb[0].mxu0
    %v211 = vadd.f32 0.0, %v210
    %v212 = vpop.f32.mrb[0].mxu0
    %v213 = vpop.f32.mrb[0].mxu0
    %v214 = vadd.f32 0.0, %v213
    %v215 = vpop.f32.mrb[0].mxu0
    %216 = vdwg.mxu0
    %v217 = vadd.f32 %v102, %v211
    %v218 = vadd.f32 %v103, %v214
    %219 = vst [vmem:[#allocation2] sm:$0xff] %v217
    %220 = vst [vmem:[#allocation2 + $0x8] sm:$0xff] %v218
    // Predicated region
    $region54: #{tpu_custom_call.1} parent=1 // pred_check
      %p221 = pneg %p96
    $region55: #{tpu_custom_call.1} parent=1 // pred_check_branch
      %223 = sbr.rel (%p221) target = $region57
    $region56: #{tpu_custom_call.1} parent=1 // pred_region
      %v224 = vld [vmem:[#allocation2] sm:$0xff]
      %v225 = vld [vmem:[#allocation2 + $0x8] sm:$0xff]
      %v226 = vpack.c.bf16 %v225, %v224
      %v227 = vld [vmem:[#allocation9] sm:$0xf]
      %v228 = vld [vmem:[#allocation9 + $0x4] sm:$0xf]
      %v229 = vld [vmem:[#allocation9 + $0x8] sm:$0xf]
      %v230 = vld [vmem:[#allocation9 + $0xc] sm:$0xf]
      %v231 = vld [vmem:[#allocation9 + $0x10] sm:$0xf]
      %v232 = vld [vmem:[#allocation9 + $0x14] sm:$0xf]
      %v233 = vld [vmem:[#allocation9 + $0x18] sm:$0xf]
      %v234 = vld [vmem:[#allocation9 + $0x1c] sm:$0xf]
      %v235 = vld [vmem:[#allocation9 + $0x20] sm:$0xf]
      %v236 = vld [vmem:[#allocation9 + $0x24] sm:$0xf]
      %v237 = vld [vmem:[#allocation9 + $0x28] sm:$0xf]
      %v238 = vld [vmem:[#allocation9 + $0x2c] sm:$0xf]
      %v239 = vld [vmem:[#allocation9 + $0x30] sm:$0xf]
      %v240 = vld [vmem:[#allocation9 + $0x34] sm:$0xf]
      %v241 = vld [vmem:[#allocation9 + $0x38] sm:$0xf]
      %v242 = vld [vmem:[#allocation9 + $0x3c] sm:$0xf]
      %v243 = vld [vmem:[%s4] sm:$0x1]
      %v245 = vlaneseq
      %v246 = vshrl.u32 %v245, 7
      %v247 = vsub.s32 0, %v246
      %v248 = vrot.slane %v243, %v247
      %v266 = vunpack.c.l.b16 %v227
      %v267 = vunpack.c.l.b16 %v228
      %v268 = vunpack.c.l.b16 %v229
      %v269 = vunpack.c.l.b16 %v230
      %v270 = vunpack.c.l.b16 %v231
      %v271 = vunpack.c.l.b16 %v232
      %v272 = vunpack.c.l.b16 %v233
      %v273 = vunpack.c.l.b16 %v234
      %v274 = vunpack.c.l.b16 %v235
      %v275 = vunpack.c.l.b16 %v236
      %v276 = vunpack.c.l.b16 %v237
      %v277 = vunpack.c.l.b16 %v238
      %v278 = vunpack.c.l.b16 %v239
      %v279 = vunpack.c.l.b16 %v240
      %v280 = vunpack.c.l.b16 %v241
      %v281 = vunpack.c.l.b16 %v242
      %v282 = vpack.c.b16 %v267, %v266
      %v283 = vpack.c.b16 %v269, %v268
      %v284 = vpack.c.b16 %v271, %v270
      %v285 = vpack.c.b16 %v273, %v272
      %v286 = vpack.c.b16 %v275, %v274
      %v287 = vpack.c.b16 %v277, %v276
      %v288 = vpack.c.b16 %v279, %v278
      %v289 = vpack.c.b16 %v281, %v280
      %298 = vmatprep.subr.bf16.mxu0 0
      %299 = vmatpush1.bf16.msra.mxu0 %v282
      %300 = vmatprep.subr.bf16.mxu0 0
      %301 = vmatpush1.bf16.msra.mxu0 %v283
      %302 = vmatprep.subr.bf16.mxu0 0
      %303 = vmatpush1.bf16.msra.mxu0 %v284
      %304 = vmatprep.subr.bf16.mxu0 0
      %305 = vmatpush1.bf16.msra.mxu0 %v285
      %306 = vmatprep.subr.bf16.mxu0 0
      %307 = vmatpush1.bf16.msra.mxu0 %v286
      %308 = vmatprep.subr.bf16.mxu0 0
      %309 = vmatpush1.bf16.msra.mxu0 %v287
      %310 = vmatprep.subr.bf16.mxu0 0
      %311 = vmatpush1.bf16.msra.mxu0 %v288
      %312 = vmatprep.subr.bf16.mxu0 0
      %313 = vmatpush1.bf16.msra.mxu0 %v289
      %314 = vmatprep.subr.bf16.mxu0 0
      %315 = vmatpush1.bf16.msra.mxu0 0
      %316 = vmatprep.subr.bf16.mxu0 0
      %317 = vmatpush1.bf16.msra.mxu0 0
      %318 = vmatprep.subr.bf16.mxu0 0
      %319 = vmatpush1.bf16.msra.mxu0 0
      %320 = vmatprep.subr.bf16.mxu0 0
      %321 = vmatpush1.bf16.msra.mxu0 0
      %322 = vmatprep.subr.bf16.mxu0 0
      %323 = vmatpush1.bf16.msra.mxu0 0
      %324 = vmatprep.subr.bf16.mxu0 0
      %325 = vmatpush1.bf16.msra.mxu0 0
      %326 = vmatprep.subr.bf16.mxu0 0
      %327 = vmatpush1.bf16.msra.mxu0 0
      %328 = vmatprep.subr.bf16.mxu0 0
      %329 = vmatpush1.bf16.msra.mxu0 0
      %330 = vmatprep.mubr.bf16.mxu0 0
      %331 = vmatmul.mubr.bf16.gmra.mrb[0].mxu0 %v226
      %v332 = vpop.f32.mrb[0].mxu0
      %v333 = vadd.f32 %v248, %v332
      %v334 = vpop.f32.mrb[0].mxu0
      %v335 = vpop.f32.mrb[0].mxu0
      %v336 = vadd.f32 %v248, %v335
      %v337 = vpop.f32.mrb[0].mxu0
      %338 = vdwg.mxu0
      %v339 = vld [vmem:[#allocation8] sm:$0xf]
      %v340 = vld [vmem:[#allocation8 + $0x4] sm:$0xf]
      %v341 = vld [vmem:[#allocation11] sm:$0xf]
      %v342 = vld [vmem:[#allocation11 + $0x4] sm:$0xf]
      %v343 = vld [vmem:[#allocation11 + $0x8] sm:$0xf]
      %v344 = vld [vmem:[#allocation11 + $0xc] sm:$0xf]
      %v345 = vld [vmem:[#allocation11 + $0x10] sm:$0xf]
      %v346 = vld [vmem:[#allocation11 + $0x14] sm:$0xf]
      %v347 = vld [vmem:[#allocation11 + $0x18] sm:$0xf]
      %v348 = vld [vmem:[#allocation11 + $0x1c] sm:$0xf]
      %v349 = vld [vmem:[#allocation11 + $0x20] sm:$0xf]
      %v350 = vld [vmem:[#allocation11 + $0x24] sm:$0xf]
      %v351 = vld [vmem:[#allocation11 + $0x28] sm:$0xf]
      %v352 = vld [vmem:[#allocation11 + $0x2c] sm:$0xf]
      %v353 = vld [vmem:[#allocation11 + $0x30] sm:$0xf]
      %v354 = vld [vmem:[#allocation11 + $0x34] sm:$0xf]
      %v355 = vld [vmem:[#allocation11 + $0x38] sm:$0xf]
      %v356 = vld [vmem:[#allocation11 + $0x3c] sm:$0xf]
      %v359 = vunpack.c.l.b16 %v339
      %v360 = vunpack.c.l.b16 %v340
      %v361 = vpack.c.b16 %v360, %v359
      %v379 = vunpack.c.l.b16 %v341
      %v380 = vunpack.c.l.b16 %v342
      %v381 = vunpack.c.l.b16 %v343
      %v382 = vunpack.c.l.b16 %v344
      %v383 = vunpack.c.l.b16 %v345
      %v384 = vunpack.c.l.b16 %v346
      %v385 = vunpack.c.l.b16 %v347
      %v386 = vunpack.c.l.b16 %v348
      %v387 = vunpack.c.l.b16 %v349
      %v388 = vunpack.c.l.b16 %v350
      %v389 = vunpack.c.l.b16 %v351
      %v390 = vunpack.c.l.b16 %v352
      %v391 = vunpack.c.l.b16 %v353
      %v392 = vunpack.c.l.b16 %v354
      %v393 = vunpack.c.l.b16 %v355
      %v394 = vunpack.c.l.b16 %v356
      %v395 = vpack.c.b16 %v380, %v379
      %v396 = vpack.c.b16 %v382, %v381
      %v397 = vpack.c.b16 %v384, %v383
      %v398 = vpack.c.b16 %v386, %v385
      %v399 = vpack.c.b16 %v388, %v387
      %v400 = vpack.c.b16 %v390, %v389
      %v401 = vpack.c.b16 %v392, %v391
      %v402 = vpack.c.b16 %v394, %v393
      %411 = vmatprep.subr.bf16.mxu0 0
      %412 = vmatpush1.bf16.msra.mxu0 %v395
      %413 = vmatprep.subr.bf16.mxu0 0
      %414 = vmatpush1.bf16.msra.mxu0 %v396
      %415 = vmatprep.subr.bf16.mxu0 0
      %416 = vmatpush1.bf16.msra.mxu0 %v397
      %417 = vmatprep.subr.bf16.mxu0 0
      %418 = vmatpush1.bf16.msra.mxu0 %v398
      %419 = vmatprep.subr.bf16.mxu0 0
      %420 = vmatpush1.bf16.msra.mxu0 %v399
      %421 = vmatprep.subr.bf16.mxu0 0
      %422 = vmatpush1.bf16.msra.mxu0 %v400
      %423 = vmatprep.subr.bf16.mxu0 0
      %424 = vmatpush1.bf16.msra.mxu0 %v401
      %425 = vmatprep.subr.bf16.mxu0 0
      %426 = vmatpush1.bf16.msra.mxu0 %v402
      %427 = vmatprep.subr.bf16.mxu0 0
      %428 = vmatpush1.bf16.msra.mxu0 0
      %429 = vmatprep.subr.bf16.mxu0 0
      %430 = vmatpush1.bf16.msra.mxu0 0
      %431 = vmatprep.subr.bf16.mxu0 0
      %432 = vmatpush1.bf16.msra.mxu0 0
      %433 = vmatprep.subr.bf16.mxu0 0
      %434 = vmatpush1.bf16.msra.mxu0 0
      %435 = vmatprep.subr.bf16.mxu0 0
      %436 = vmatpush1.bf16.msra.mxu0 0
      %437 = vmatprep.subr.bf16.mxu0 0
      %438 = vmatpush1.bf16.msra.mxu0 0
      %439 = vmatprep.subr.bf16.mxu0 0
      %440 = vmatpush1.bf16.msra.mxu0 0
      %441 = vmatprep.subr.bf16.mxu0 0
      %442 = vmatpush1.bf16.msra.mxu0 0
      %443 = vmatprep.mubr.bf16.mxu0 0
      %444 = vmatmul.mubr.bf16.gmra.mrb[0].mxu0 %v361
      %v445 = vpop.f32.mrb[0].mxu0
      %v446 = vadd.f32 0.0, %v445
      %v447 = vpop.f32.mrb[0].mxu0
      %v448 = vpop.f32.mrb[0].mxu0
      %v449 = vadd.f32 0.0, %v448
      %v450 = vpop.f32.mrb[0].mxu0
      %451 = vdwg.mxu0
      %v452 = vadd.f32 %v333, %v446
      %v453 = vadd.f32 %v336, %v449
      %v454 = vld [vmem:[%s6] sm:$0x1]
      %v456 = vlaneseq
      %v457 = vshrl.u32 %v456, 7
      %v458 = vsub.s32 0, %v457
      %v459 = vrot.slane %v454, %v458
      %v461 = vadd.f32 %v452, %v459
      %v462 = vadd.f32 %v453, %v459
      %v463 = vmax.f32 %v461, 0.0
      %v464 = vmax.f32 %v462, 0.0
      %465 = vst [vmem:[#allocation12] sm:$0xff] %v463
      %466 = vst [vmem:[#allocation12 + $0x8] sm:$0xff] %v464
    $region57: #{tpu_custom_call.1} parent=1 // pred_fallthru
      _
    // Predicated region
    $region58: #{tpu_custom_call.1} parent=1 // pred_check
      _
    $region59: #{tpu_custom_call.1} parent=1 // pred_check_branch
      %468 = sbr.rel (0) target = $region61
    $region60: #{tpu_custom_call.1} parent=1 // pred_region
      %s470 = ssub.s32 256, 256
      %471 = vsyncadd [#allocation5], %s470
      %s472 = sshll.u32 [#allocation12], 4
      %s473 = int_to_ptr.vmem [resolvable:$true] %s472
      %478 = dma.vmem_to_hbm [thread:$0]  %s473, 256, %s7, [#allocation5], 128, 128, 8
    $region61: #{tpu_custom_call.1} parent=1 // pred_fallthru
      _
    // Predicated region
    $region62: #{tpu_custom_call.1} parent=1 // pred_check
      _
    $region63: #{tpu_custom_call.1} parent=1 // pred_check_branch
      %480 = sbr.rel (0) target = $region65
    $region64: #{tpu_custom_call.1} parent=1 // pred_region
      %481 = dma.done [#allocation5], 256
    $region65: #{tpu_custom_call.1} parent=1 // pred_fallthru
      _
    %482 = vsyncpa [#allocation4], 1
    %483 = vsyncpa [#allocation7], 1
    %484 = vsyncpa [#allocation10], 1
    %485 = vsyncpa [#allocation5], 1

</llo_original>
